<compile_context>
chip_gen: v6e
topology: v6e:2x2x1
jax: 0.10.0
libtpu: 0.0.40
codegen_flags: <defaults>
</compile_context>

<pallas_src>
import heapq
import numpy as np

import jax
import jax.numpy as jnp
from jax.experimental import pallas as pl
from jax.experimental.pallas import tpu as pltpu


class SimpleHuffmanTree:
    """Deterministic Huffman tree: internal_nodes + word -> (code bits, internal-node path)."""

    def __init__(self, word_freqs):
        heap = []
        counter = 0
        for wid, freq in word_freqs:
            heap.append((freq, counter, ("leaf", wid)))
            counter += 1
        heapq.heapify(heap)
        self.children = {}
        self.internal_nodes = []
        next_internal = 0
        while len(heap) > 1:
            f1, _, n1 = heapq.heappop(heap)
            f2, _, n2 = heapq.heappop(heap)
            iid = next_internal
            next_internal += 1
            self.internal_nodes.append(iid)
            self.children[iid] = (n1, n2)
            heapq.heappush(heap, (f1 + f2, counter, ("internal", iid)))
            counter += 1
        self.root = heap[0][2]

    def get_all_paths(self):
        paths = {}

        def walk(node, code, path):
            kind, idx = node
            if kind == "leaf":
                paths[idx] = (list(code), list(path))
            else:
                left, right = self.children[idx]
                walk(left, code + [0], path + [idx])
                walk(right, code + [1], path + [idx])

        walk(self.root, [], [])
        return paths


def _round_up(x, m):
    return ((x + m - 1) // m) * m


def _hs_loss_kernel(tab_ref, tgt_ref, sgn_ref, out_ref):
    """One batch tile.

    tab_ref : (D, Np)      internal-embedding table, transposed + lane-padded (VMEM-resident)
    tgt_ref : (TB, D)      target (input) embeddings for this batch tile
    sgn_ref : (TB, Np)     dense sign matrix: +1 (bit==1), -1 (bit==0), 0 (node not on path)
    out_ref : (1, 1, 128)  replicated f32 partial sum for this tile
    """
    # All-internal-node scores in a single MXU matmul (bf16 in, f32 accumulate).
    scores = jnp.dot(tgt_ref[...], tab_ref[...],
                     preferred_element_type=jnp.float32)          # (TB, Np)
    s = sgn_ref[...].astype(jnp.float32)                          # (TB, Np)

    # -logsigmoid(sign * score) = softplus(-sign * score), numerically stable.
    z = -s * scores
    softplus = jnp.maximum(z, 0.0) + jnp.log1p(jnp.exp(-jnp.abs(z)))
    masked = jnp.where(jnp.abs(s) > 0.5, softplus, jnp.zeros_like(softplus))

    partial = jnp.sum(masked)                                     # scalar for this tile
    out_ref[...] = jnp.full(out_ref.shape, partial, dtype=jnp.float32)


def hierarchical_softmax_loss(input_emb, internal_emb, target_words,
                              path_points, path_signs, *,
                              batch_tile=256, storage_dtype=jnp.bfloat16):
    """mean over batch of sum_j -logsigmoid(sign_j * <emb_in[tgt], emb_int[path_j]>)."""
    B = int(target_words.shape[0])
    if B == 0:
        return jnp.float32(0.0)
    num_internal, D = internal_emb.shape

    # ---- wrapper-side layout plumbing (small XLA ops, no duplicated HBM slab) ----
    # Dense per-row sign matrix over internal nodes. Padded path slots carry sign 0 and
    # point at node 0, so scatter-ADD leaves legitimate entries untouched.
    Np = _round_up(max(num_internal, 1), 128)
    sgn = jnp.zeros((B, Np), jnp.float32)
    rows = jnp.arange(B, dtype=jnp.int32)[:, None]
    sgn = sgn.at[rows, path_points].add(path_signs.astype(jnp.float32))
    sgn = sgn.astype(storage_dtype)                                # +-1/0 exact in bf16

    # VMEM-resident, lane-padded, transposed internal-embedding table.
    tabT = jnp.zeros((D, Np), storage_dtype)
    tabT = tabT.at[:, :num_internal].set(internal_emb.T.astype(storage_dtype))

    # Target embeddings (== SkipGramModel forward), bf16 storage / f32 compute in kernel.
    tgt = input_emb[target_words].astype(storage_dtype)            # (B, D)

    # ---- batch tiling: big tiles, and >= 2 tiles so "parallel" can shard across
    # v7x's two TensorCores. Padded rows have all-zero signs -> contribute 0.
    TB = min(batch_tile, _round_up(max(pl.cdiv(B, 2), 8), 8))
    Bp = max(_round_up(B, TB), 2 * TB)
    if Bp != B:
        pad = Bp - B
        tgt = jnp.pad(tgt, ((0, pad), (0, 0)))
        sgn = jnp.pad(sgn, ((0, pad), (0, 0)))
    num_tiles = Bp // TB

    partials = pl.pallas_call(
        _hs_loss_kernel,
        out_shape=jax.ShapeDtypeStruct((num_tiles, 1, 128), jnp.float32),
        grid_spec=pltpu.PrefetchScalarGridSpec(
            num_scalar_prefetch=0,
            grid=(num_tiles,),
            in_specs=[
                # same block every step -> table stays resident in VMEM (one DMA)
                pl.BlockSpec((D, Np), lambda t: (0, 0)),
                pl.BlockSpec((TB, D), lambda t: (t, 0)),
                pl.BlockSpec((TB, Np), lambda t: (t, 0)),
            ],
            out_specs=pl.BlockSpec((1, 1, 128), lambda t: (t, 0, 0)),
        ),
        compiler_params=pltpu.CompilerParams(
            dimension_semantics=("parallel",),       # independent per-tile partials
            vmem_limit_bytes=32 * 1024 * 1024,       # explicit budget (v5e 16MiB default)
        ),
    )(tabT, tgt, sgn)

    # Final tiny reduce of per-tile partials + 1/B scaling outside the kernel.
    return jnp.sum(partials[:, 0, 0]) / B


def ref_loss(input_emb, internal_emb, target_words, path_points, path_signs):
    """Pure-JAX f32 reference with the module's semantics."""
    t = input_emb[target_words]                  # (B, D)
    ie = internal_emb[path_points]               # (B, L, D)
    scores = jnp.einsum("bd,bld->bl", t, ie)
    sign = path_signs.astype(jnp.float32)
    z = -sign * scores
    sp = jnp.maximum(z, 0.0) + jnp.log1p(jnp.exp(-jnp.abs(z)))
    masked = jnp.where(path_signs != 0, sp, 0.0)
    return masked.sum() / path_points.shape[0]


if __name__ == "__main__":
    vocab_size = 50
    embedding_dim = 32
    batch_size = 8

    # deterministic Huffman tree over synthetic frequencies
    freqs = [(w, vocab_size - w) for w in range(vocab_size)]
    tree = SimpleHuffmanTree(freqs)
    word_paths = tree.get_all_paths()
    num_internal = len(tree.internal_nodes)

    key = jax.random.PRNGKey(0)
    k1, k2, k3, k4 = jax.random.split(key, 4)
    bound = 0.5 / embedding_dim
    # input_embeddings: uniform(-0.5/D, 0.5/D) like the module
    input_emb = jax.random.uniform(
        k1, (vocab_size, embedding_dim), jnp.float32, -bound, bound)
    # NOTE: the PyTorch module zero-inits internal embeddings; small random values here
    # so the kernel computes nontrivial scores.
    internal_emb = jax.random.uniform(
        k2, (num_internal, embedding_dim), jnp.float32, -bound, bound)

    target_words = jax.random.randint(k3, (batch_size,), 0, vocab_size, jnp.int32)
    context_words = jax.random.randint(k4, (batch_size,), 0, vocab_size, jnp.int32)

    # host-side glue: per-context-word Huffman (code, path) -> padded int32 tensors
    # (mirrors the module's self.word_paths lookup; padded slots get sign 0)
    ctx_np = np.asarray(context_words)
    max_len = max(len(word_paths[w][1]) for w in range(vocab_size))
    pts = np.zeros((batch_size, max_len), np.int32)   # padded with node 0 (sign 0 -> masked)
    sgn = np.zeros((batch_size, max_len), np.int32)   # +1: bit==1, -1: bit==0, 0: skip
    for i in range(batch_size):
        cw = int(ctx_np[i])
        if cw not in word_paths:
            continue
        code, path = word_paths[cw]
        if not code or not path:
            continue
        for j, point in enumerate(path):
            if point >= num_internal:
                continue
            pts[i, j] = point
            sgn[i, j] = 1 if code[j] == 1 else -1

    pts = jnp.asarray(pts)
    sgn = jnp.asarray(sgn)

    loss = hierarchical_softmax_loss(input_emb, internal_emb, target_words, pts, sgn)
    loss = jax.block_until_ready(loss)

    ref = ref_loss(input_emb, internal_emb, target_words, pts, sgn)
    # bf16 storage of embeddings -> relaxed tolerance vs the f32 reference
    assert np.allclose(np.asarray(loss), np.asarray(ref), rtol=1e-3, atol=1e-3), (loss, ref)
    print("KERNEL_OK")
</pallas_src>

<mosaic_0001>
module attributes {stable_mosaic.version = 11 : i64} {
  func.func @_hs_loss_kernel(%arg0: i32, %arg1: memref<32x128xbf16, #tpu.memory_space<vmem>>, %arg2: memref<8x32xbf16, #tpu.memory_space<vmem>>, %arg3: memref<8x128xbf16, #tpu.memory_space<vmem>>, %arg4: memref<1x1x128xf32, #tpu.memory_space<vmem>>) attributes {dimension_semantics = [#tpu.dimension_semantics<parallel>], iteration_bounds = array<i64: 2>, scalar_prefetch = 0 : i64, scratch_operands = 0 : i64, tpu.core_type = #tpu.core_type<tc>, window_params = [{pipeline_mode = #tpu.pipeline_mode<synchronous>, transform_indices = @transform_0, window_bounds = array<i64: 32, 128>}, {transform_indices = @transform_1, window_bounds = array<i64: 8, 32>}, {transform_indices = @transform_2, window_bounds = array<i64: 8, 128>}, {transform_indices = @transform_3, window_bounds = array<i64: 1, 1, 128>}]} {
    %c0 = arith.constant 0 : index
    %c0_0 = arith.constant 0 : index
    %0 = vector.load %arg2[%c0, %c0_0] : memref<8x32xbf16, #tpu.memory_space<vmem>>, vector<8x32xbf16>
    %c0_1 = arith.constant 0 : index
    %c0_2 = arith.constant 0 : index
    %1 = vector.load %arg1[%c0_1, %c0_2] : memref<32x128xbf16, #tpu.memory_space<vmem>>, vector<32x128xbf16>
    %cst = arith.constant dense<0.000000e+00> : vector<8x128xf32>
    %2 = tpu.matmul %0, %1, %cst {dimension_numbers = #tpu.dot_dimension_numbers<[1], [0], [0], [1], [0, 0, 1, 1], [], []>} : vector<8x32xbf16>, vector<32x128xbf16>, vector<8x128xf32> -> vector<8x128xf32>
    %c0_3 = arith.constant 0 : index
    %c0_4 = arith.constant 0 : index
    %3 = vector.load %arg3[%c0_3, %c0_4] : memref<8x128xbf16, #tpu.memory_space<vmem>>, vector<8x128xbf16>
    %4 = arith.extf %3 : vector<8x128xbf16> to vector<8x128xf32>
    %cst_5 = arith.constant 0.000000e+00 : f32
    %5 = vector.broadcast %cst_5 : f32 to vector<8x128xf32>
    %6 = arith.subf %5, %4 : vector<8x128xf32>
    %7 = arith.mulf %6, %2 : vector<8x128xf32>
    %cst_6 = arith.constant 0.000000e+00 : f32
    %8 = vector.broadcast %cst_6 : f32 to vector<8x128xf32>
    %9 = arith.maximumf %7, %8 : vector<8x128xf32>
    %10 = math.absf %7 : vector<8x128xf32>
    %cst_7 = arith.constant 0.000000e+00 : f32
    %11 = vector.broadcast %cst_7 : f32 to vector<8x128xf32>
    %12 = arith.subf %11, %10 : vector<8x128xf32>
    %13 = math.exp %12 : vector<8x128xf32>
    %14 = math.log1p %13 : vector<8x128xf32>
    %15 = arith.addf %9, %14 : vector<8x128xf32>
    %16 = math.absf %4 : vector<8x128xf32>
    %cst_8 = arith.constant 5.000000e-01 : f32
    %17 = vector.broadcast %cst_8 : f32 to vector<8x128xf32>
    %18 = arith.cmpf ogt, %16, %17 : vector<8x128xf32>
    %cst_9 = arith.constant 0.000000e+00 : f32
    %19 = vector.broadcast %cst_9 : f32 to vector<8x128xf32>
    %20 = arith.select %18, %15, %19 : vector<8x128xi1>, vector<8x128xf32>
    %21 = vector.shape_cast %20 : vector<8x128xf32> to vector<1x8x128xf32>
    %cst_10 = arith.constant dense<0.000000e+00> : vector<1xf32>
    %22 = vector.multi_reduction <add>, %21, %cst_10 [1, 2] : vector<1x8x128xf32> to vector<1xf32>
    %23 = vector.shape_cast %22 : vector<1xf32> to vector<1x1x1xf32>
    %24 = vector.extract %23[0, 0, 0] : f32 from vector<1x1x1xf32>
    %25 = vector.broadcast %24 : f32 to vector<1x1x128xf32>
    %c0_11 = arith.constant 0 : index
    %c0_12 = arith.constant 0 : index
    %c0_13 = arith.constant 0 : index
    %26 = vector.load %arg4[%c0_11, %c0_12, %c0_13] : memref<1x1x128xf32, #tpu.memory_space<vmem>>, vector<1x1x128xf32>
    tpu.vector_store %arg4[%c0_11, %c0_12, %c0_13], %25 {strides = array<i32>} : memref<1x1x128xf32, #tpu.memory_space<vmem>>, vector<1x1x128xf32>,
    return
  }
  func.func @transform_0(%arg0: i32) -> (i32, i32) {
    %c0_i32 = arith.constant 0 : i32
    %c0_i32_0 = arith.constant 0 : i32
    %c0_i32_1 = arith.constant 0 : i32
    return %c0_i32, %c0_i32_0 : i32, i32
  }
  func.func @transform_1(%arg0: i32) -> (i32, i32) {
    %c0_i32 = arith.constant 0 : i32
    %c0_i32_0 = arith.constant 0 : i32
    return %arg0, %c0_i32 : i32, i32
  }
  func.func @transform_2(%arg0: i32) -> (i32, i32) {
    %c0_i32 = arith.constant 0 : i32
    %c0_i32_0 = arith.constant 0 : i32
    return %arg0, %c0_i32 : i32, i32
  }
  func.func @transform_3(%arg0: i32) -> (i32, i32, i32) {
    %c0_i32 = arith.constant 0 : i32
    %c0_i32_0 = arith.constant 0 : i32
    %c0_i32_1 = arith.constant 0 : i32
    return %arg0, %c0_i32, %c0_i32_0 : i32, i32, i32
  }
}

</mosaic_0001>

<llo_original>
// kernel: tpu_custom_call.1
$region0: #{tpu_custom_call.1}
  #allocation0 [shape = 'u32[]', space=smem, size = 0x4, offset = 0x4, fixed_abs, tag = 'smem constant byte address 0x4 - core index']
  #allocation1 [shape = 'u32[144,128]{1,0:T(1,128)}', space=vmem, size = 0x12000, scoped, tag = 'internal scratch']
  %s0 = inlined_call_operand.hbm [shape: bf16[32,128], index: 0, kind: input, shape index: {}]
  %s1 = inlined_call_operand.hbm [shape: bf16[16,32], index: 1, kind: input, shape index: {}]
  %s2 = inlined_call_operand.hbm [shape: bf16[16,128], index: 2, kind: input, shape index: {}]
  %s3 = inlined_call_operand.hbm [shape: f32[2,1,128], index: 3, kind: output, shape index: {}]
  %s4 = sld [smem:[#allocation0]]
  $region57: #{tpu_custom_call.1} parent=0
    _
  %s6 = ssub.s32 1, %s4
  %s7 = scalar_select 0, %s6, %s4
  $region1: #{tpu_custom_call.1} parent=0
    #allocation2 [shape = 'u8[8192]{0}', space=vmem, size = 0x2000, scoped, tag = 'input window, operand 0, single buffered']
    #allocation3 [shape = 's32[2]{0}', space=sflag, size = 0x8, scoped, tag = 'scoped memory for tpu_custom_call.1']
    #allocation4 [shape = 's32[2]{0}', space=sflag, size = 0x8, scoped, tag = 'scoped memory for tpu_custom_call.1']
    #allocation5 [shape = 'u8[4096]{0}', space=vmem, size = 0x1000, scoped, tag = 'input window, operand 1']
    #allocation6 [shape = 's32[2]{0}', space=sflag, size = 0x8, scoped, tag = 'scoped memory for tpu_custom_call.1']
    #allocation7 [shape = 'u8[4096]{0}', space=vmem, size = 0x1000, scoped, tag = 'input window, operand 2']
    #allocation8 [shape = 'u8[1024]{0}', space=vmem, size = 0x400, scoped, tag = 'output window, operand 0']
    %8 = vsyncpa [#allocation3], 0
    %9 = vsyncpa [#allocation6], 0
    %s10 = scalar_lea.sflag [#allocation6], 1
    %11 = vsyncpa %s10, 0
    %12 = vsyncpa [#allocation4], 0
    %s13 = scalar_lea.sflag [#allocation4], 1
    %14 = vsyncpa %s13, 0
    loop: start=0, step=1, limit=4
    $region2: #{tpu_custom_call.1} parent=1 // loop_pre_header
      _
    $region3: #{tpu_custom_call.1} parent=1 // loop_header
      %s16 = sphi 0, %s20
      %p17 = scmp.ge.s32.totalorder %s16, 4
      %s24 = sphi 0, %s24
      %s26 = sphi 0, %s24
      %s27 = sphi 0, %s26
      %s41 = sphi 0, %s27
      %s47 = sphi 0, %s49
      %s50 = sphi 0, %s47
      %s51 = sphi 0, %s50
      %s67 = sphi 0, %s51
      %s73 = sphi 0, %s75
      %s76 = sphi 0, %s73
      %s77 = sphi 0, %s76
      %s93 = sphi 0, %s77
      %s99 = sphi 0, %s101
      %s102 = sphi 0, %s99
      %s103 = sphi 0, %s102
      %s119 = sphi 0, %s103
    $region4: #{tpu_custom_call.1} parent=1 // loop_header_branch
      %19 = sbr.rel (%p17) target = $region8
    $region5: #{tpu_custom_call.1} parent=1 // loop_body
      %s21 = ssub.s32 %s16, 1
      %s22 = ssub.s32 %s16, 2
      %s23 = sadd.s32 %s16, 1
      %s25 = sadd.s32 %s24, 1
      %p28 = scmp.eq.s32.totalorder %s16, 1
      %p29 = scmp.ne.s32.totalorder %s24, %s26
      %p30 = scmp.eq.s32.totalorder %s16, 0
      %p31 = por %p29, %p30
      %p32 = scmp.ne.s32.totalorder %s24, %s26
      %p33 = scmp.eq.s32.totalorder %s21, 1
      %p34 = por %p32, %p33
      %p35 = scmp.ne.s32.totalorder %s26, %s27
      %p36 = scmp.eq.s32.totalorder %s21, 0
      %p37 = por %p35, %p36
      %p38 = scmp.ne.s32.totalorder %s26, %s27
      %p39 = scmp.eq.s32.totalorder %s22, 1
      %p40 = por %p38, %p39
      %p42 = scmp.ne.s32.totalorder %s27, %s41
      %p43 = scmp.eq.s32.totalorder %s22, 0
      %p44 = por %p42, %p43
      %s45 = ssub.s32 %s16, %s23
      %p46 = scmp.eq.s32.totalorder %s45, 0
      %s48 = sadd.s32 %s47, 1
      %s49 = scalar_select %p46, %s47, %s48
      %p52 = pneg %p46
      %p53 = scmp.eq.s32.totalorder %s16, 1
      %p54 = por %p52, %p53
      %p55 = scmp.ne.s32.totalorder %s47, %s50
      %p56 = scmp.eq.s32.totalorder %s16, 0
      %p57 = por %p55, %p56
      %p58 = scmp.ne.s32.totalorder %s47, %s50
      %p59 = scmp.eq.s32.totalorder %s21, 1
      %p60 = por %p58, %p59
      %p61 = scmp.ne.s32.totalorder %s50, %s51
      %p62 = scmp.eq.s32.totalorder %s21, 0
      %p63 = por %p61, %p62
      %p64 = scmp.ne.s32.totalorder %s50, %s51
      %p65 = scmp.eq.s32.totalorder %s22, 1
      %p66 = por %p64, %p65
      %p68 = scmp.ne.s32.totalorder %s51, %s67
      %p69 = scmp.eq.s32.totalorder %s22, 0
      %p70 = por %p68, %p69
      %s71 = ssub.s32 %s16, %s23
      %p72 = scmp.eq.s32.totalorder %s71, 0
      %s74 = sadd.s32 %s73, 1
      %s75 = scalar_select %p72, %s73, %s74
      %p78 = pneg %p72
      %p79 = scmp.eq.s32.totalorder %s16, 1
      %p80 = por %p78, %p79
      %p81 = scmp.ne.s32.totalorder %s73, %s76
      %p82 = scmp.eq.s32.totalorder %s16, 0
      %p83 = por %p81, %p82
      %p84 = scmp.ne.s32.totalorder %s73, %s76
      %p85 = scmp.eq.s32.totalorder %s21, 1
      %p86 = por %p84, %p85
      %p87 = scmp.ne.s32.totalorder %s76, %s77
      %p88 = scmp.eq.s32.totalorder %s21, 0
      %p89 = por %p87, %p88
      %p90 = scmp.ne.s32.totalorder %s76, %s77
      %p91 = scmp.eq.s32.totalorder %s22, 1
      %p92 = por %p90, %p91
      %p94 = scmp.ne.s32.totalorder %s77, %s93
      %p95 = scmp.eq.s32.totalorder %s22, 0
      %p96 = por %p94, %p95
      %s97 = ssub.s32 %s16, %s23
      %p98 = scmp.eq.s32.totalorder %s97, 0
      %s100 = sadd.s32 %s99, 1
      %s101 = scalar_select %p98, %s99, %s100
      %p104 = pneg %p98
      %p105 = scmp.eq.s32.totalorder %s16, 1
      %p106 = por %p104, %p105
      %p107 = scmp.ne.s32.totalorder %s99, %s102
      %p108 = scmp.eq.s32.totalorder %s16, 0
      %p109 = por %p107, %p108
      %p110 = scmp.ne.s32.totalorder %s99, %s102
      %p111 = scmp.eq.s32.totalorder %s21, 1
      %p112 = por %p110, %p111
      %p113 = scmp.ne.s32.totalorder %s102, %s103
      %p114 = scmp.eq.s32.totalorder %s21, 0
      %p115 = por %p113, %p114
      %p116 = scmp.ne.s32.totalorder %s102, %s103
      %p117 = scmp.eq.s32.totalorder %s22, 1
      %p118 = por %p116, %p117
      %p120 = scmp.ne.s32.totalorder %s103, %s119
      %p121 = scmp.eq.s32.totalorder %s22, 0
      %p122 = por %p120, %p121
      %p123 = scmp.le.s32.totalorder 1, %s16
      %p124 = scmp.lt.s32.totalorder %s16, 3
      %p125 = pnand %p123, %p124
      %p126 = pneg %p125
      // Predicated region
      $region9: #{tpu_custom_call.1} parent=5 // pred_check
        _
      $region10: #{tpu_custom_call.1} parent=5 // pred_check_branch
        %128 = sbr.rel (%p125) target = $region12
      $region11: #{tpu_custom_call.1} parent=5 // pred_region
        %s129 = ssub.s32 %s16, 1
        // Predicated region
        $region13: #{tpu_custom_call.1} parent=11 // pred_check
          %p130 = pneg %p37
        $region14: #{tpu_custom_call.1} parent=11 // pred_check_branch
          %132 = sbr.rel (%p130) target = $region16
        $region15: #{tpu_custom_call.1} parent=11 // pred_region
          %s134 = ssub.s32 256, 256
          %135 = vsyncadd [#allocation3], %s134
          %s136 = sshll.u32 [#allocation2], 4
          %s137 = int_to_ptr.vmem [resolvable:$true] %s136
          %142 = dma.hbm_to_vmem [thread:$0]  %s0, 256, %s137, [#allocation3], 64, 64, 4
        $region16: #{tpu_custom_call.1} parent=11 // pred_fallthru
          _
      $region12: #{tpu_custom_call.1} parent=5 // pred_fallthru
        _
      %p143 = scmp.lt.s32.totalorder %s16, 2
      // Predicated region
      $region17: #{tpu_custom_call.1} parent=5 // pred_check
        %p144 = pneg %p143
      $region18: #{tpu_custom_call.1} parent=5 // pred_check_branch
        %146 = sbr.rel (%p144) target = $region20
      $region19: #{tpu_custom_call.1} parent=5 // pred_region
        // Predicated region
        $region21: #{tpu_custom_call.1} parent=19 // pred_check
          %p147 = pneg %p57
        $region22: #{tpu_custom_call.1} parent=19 // pred_check_branch
          %149 = sbr.rel (%p147) target = $region24
        $region23: #{tpu_custom_call.1} parent=19 // pred_region
          %s150 = sand.u32 %s16, 1
          %s151 = scalar_lea.sflag [#allocation6], %s150
          %s152 = sand.u32 %s47, 1
          %s153 = smul.addr %s152, 4
          %s154 = scalar_lea.vmem [#allocation5], %s153
          %s156 = ssub.s32 64, 64
          %157 = vsyncadd %s151, %s156
          %s158 = smul.addr %s16, 64
          %s159 = scalar_lea.hbm %s1, %s158
          %s161 = sshll.u32 %s154, 4
          %s162 = int_to_ptr.vmem [resolvable:$true] %s161
          %164 = dma.hbm_to_vmem [thread:$0]  %s159, 64, %s162, %s151
        $region24: #{tpu_custom_call.1} parent=19 // pred_fallthru
          _
        // Predicated region
        $region25: #{tpu_custom_call.1} parent=19 // pred_check
          %p165 = pneg %p83
        $region26: #{tpu_custom_call.1} parent=19 // pred_check_branch
          %167 = sbr.rel (%p165) target = $region28
        $region27: #{tpu_custom_call.1} parent=19 // pred_region
          %s168 = sand.u32 %s16, 1
          %s169 = scalar_lea.sflag [#allocation6], %s168
          %s170 = sand.u32 %s73, 1
          %s171 = smul.addr %s170, 4
          %s172 = scalar_lea.vmem [#allocation7], %s171
          %s174 = ssub.s32 64, 64
          %175 = vsyncadd %s169, %s174
          %s176 = smul.addr %s16, 64
          %s177 = scalar_lea.hbm %s2, %s176
          %s179 = sshll.u32 %s172, 4
          %s180 = int_to_ptr.vmem [resolvable:$true] %s179
          %182 = dma.hbm_to_vmem [thread:$0]  %s177, 64, %s180, %s169
        $region28: #{tpu_custom_call.1} parent=19 // pred_fallthru
          _
      $region20: #{tpu_custom_call.1} parent=5 // pred_fallthru
        _
      %p183 = scmp.le.s32.totalorder 1, %s16
      %p184 = scmp.lt.s32.totalorder %s16, 3
      %p185 = pnand %p183, %p184
      %p186 = pneg %p185
      // Predicated region
      $region29: #{tpu_custom_call.1} parent=5 // pred_check
        _
      $region30: #{tpu_custom_call.1} parent=5 // pred_check_branch
        %188 = sbr.rel (%p185) target = $region32
      $region31: #{tpu_custom_call.1} parent=5 // pred_region
        %s189 = ssub.s32 %s16, 1
        // Predicated region
        $region33: #{tpu_custom_call.1} parent=31 // pred_check
          %p190 = pneg %p37
        $region34: #{tpu_custom_call.1} parent=31 // pred_check_branch
          %192 = sbr.rel (%p190) target = $region36
        $region35: #{tpu_custom_call.1} parent=31 // pred_region
          %193 = dma.done [#allocation3], 256
        $region36: #{tpu_custom_call.1} parent=31 // pred_fallthru
          _
        %s194 = sand.u32 %s21, 1
        %s195 = scalar_lea.sflag [#allocation6], %s194
        %s196 = sand.u32 %s50, 1
        %s197 = smul.addr %s196, 4
        %s198 = scalar_lea.vmem [#allocation5], %s197
        // Predicated region
        $region37: #{tpu_custom_call.1} parent=31 // pred_check
          %p199 = pneg %p63
        $region38: #{tpu_custom_call.1} parent=31 // pred_check_branch
          %201 = sbr.rel (%p199) target = $region40
        $region39: #{tpu_custom_call.1} parent=31 // pred_region
          %202 = dma.done %s195, 64
        $region40: #{tpu_custom_call.1} parent=31 // pred_fallthru
          _
        %s203 = sand.u32 %s21, 1
        %s204 = scalar_lea.sflag [#allocation6], %s203
        %s205 = sand.u32 %s76, 1
        %s206 = smul.addr %s205, 4
        %s207 = scalar_lea.vmem [#allocation7], %s206
        // Predicated region
        $region41: #{tpu_custom_call.1} parent=31 // pred_check
          %p208 = pneg %p89
        $region42: #{tpu_custom_call.1} parent=31 // pred_check_branch
          %210 = sbr.rel (%p208) target = $region44
        $region43: #{tpu_custom_call.1} parent=31 // pred_region
          %211 = dma.done %s204, 64
        $region44: #{tpu_custom_call.1} parent=31 // pred_fallthru
          _
        %p212 = pneg %p37
        %p213 = pneg %p34
        %s214 = sand.u32 %s21, 1
        %s215 = scalar_lea.sflag [#allocation6], %s214
        %s216 = sand.u32 %s50, 1
        %s217 = smul.addr %s216, 4
        %s218 = scalar_lea.vmem [#allocation5], %s217
        %p219 = pneg %p63
        %p220 = pneg %p60
        %s221 = sand.u32 %s21, 1
        %s222 = scalar_lea.sflag [#allocation6], %s221
        %s223 = sand.u32 %s76, 1
        %s224 = smul.addr %s223, 4
        %s225 = scalar_lea.vmem [#allocation7], %s224
        %p226 = pneg %p89
        %p227 = pneg %p86
        %p228 = pneg %p115
        %p229 = pneg %p112
        %s230 = sand.u32 %s102, 1
        %s231 = scalar_lea.sflag [#allocation4], %s230
        %s232 = sand.u32 %s102, 1
        %s233 = scalar_lea.vmem [#allocation8], %s232
        %v235 = vld [vmem:[%s198] sm:$0xf]
        %v236 = vld [vmem:[#allocation2] sm:$0xf]
        %v237 = vld [vmem:[#allocation2 + $0x4] sm:$0xf]
        %v238 = vld [vmem:[#allocation2 + $0x8] sm:$0xf]
        %v239 = vld [vmem:[#allocation2 + $0xc] sm:$0xf]
        %v244 = vunpack.c.l.b16 %v236
        %v245 = vunpack.c.l.b16 %v237
        %v246 = vunpack.c.l.b16 %v238
        %v247 = vunpack.c.l.b16 %v239
        %v248 = vpack.c.b16 %v245, %v244
        %v249 = vpack.c.b16 %v247, %v246
        %vm252 = vcmask 261120
        %v254 = vsel %vm252, %v235, 0
        %256 = vmatprep.subr.bf16.mxu0 0
        %257 = vmatpush1.bf16.msra.mxu0 0
        %258 = vmatprep.subr.bf16.mxu0 0
        %259 = vmatpush1.bf16.msra.mxu0 0
        %260 = vmatprep.subr.bf16.mxu0 0
        %261 = vmatpush1.bf16.msra.mxu0 0
        %262 = vmatprep.subr.bf16.mxu0 0
        %263 = vmatpush1.bf16.msra.mxu0 0
        %264 = vmatprep.subr.bf16.mxu0 0
        %265 = vmatpush1.bf16.msra.mxu0 0
        %266 = vmatprep.subr.bf16.mxu0 0
        %267 = vmatpush1.bf16.msra.mxu0 0
        %268 = vmatprep.subr.bf16.mxu0 0
        %269 = vmatpush1.bf16.msra.mxu0 %v249
        %270 = vmatprep.subr.bf16.mxu0 0
        %271 = vmatpush1.bf16.msra.mxu0 %v248
        %272 = vmatprep.subr.bf16.mxu0 0
        %273 = vmatpush2.bf16.msra.mxu0 0
        %274 = vmatprep.subr.bf16.mxu0 0
        %275 = vmatpush2.bf16.msra.mxu0 0
        %276 = vmatprep.subr.bf16.mxu0 0
        %277 = vmatpush2.bf16.msra.mxu0 0
        %278 = vmatprep.subr.bf16.mxu0 0
        %279 = vmatpush2.bf16.msra.mxu0 0
        %280 = vmatprep.subr.bf16.mxu0 0
        %281 = vmatpush2.bf16.msra.mxu0 0
        %282 = vmatprep.subr.bf16.mxu0 0
        %283 = vmatpush2.bf16.msra.mxu0 0
        %284 = vmatprep.subr.bf16.mxu0 0
        %285 = vmatpush2.bf16.msra.mxu0 0
        %286 = vmatprep.subr.bf16.mxu0 0
        %287 = vmatpush2.bf16.msra.mxu0 0
        %288 = vmatprep.mubr.bf16.mxu0 0
        %289 = vmatmul.mubr.bf16.gmra.mxu0 %v254
        %v290 = vpop.f32.mrf.mxu0
        %v291 = vadd.f32 0.0, %v290
        %v292 = vpop.f32.mrf.mxu0
        %v293 = vpop.f32.mrf.mxu0
        %v294 = vpop.f32.mrf.mxu0
        %295 = vdwg.mxu0
        %v296 = vld [vmem:[%s207] sm:$0xf]
        %v297 = vunpack.c.l.bf16 %v296
        %v298 = vsub.f32 0.0, %v297
        %v299 = vmul.f32 %v298, %v291
        %v300 = vmax.f32 %v299, 0.0
        %v301 = vand.u32 2147483647, %v299
        %v302 = vsub.f32 0.0, %v301
        %v303 = vmul.f32 %v302, 1.442695
        %v304 = vpow.pop %v303
        %v305 = vadd.f32 %v304, 1.0
        %v306 = vlog2.pop %v305
        %v307 = vmul.f32 %v306, 0.6931472
        %v308 = vmul.f32 -0.5, %v304
        %v309 = vadd.f32 %v308, 1.0
        %v310 = vmul.f32 %v309, %v304
        %v311 = vand.u32 2147483647, %v304
        %vm312 = vcmp.lt.f32.partialorder %v311, 0.0004427343
        %v313 = vsel %vm312, %v310, %v307
        %v314 = vadd.f32 %v300, %v313
        %v315 = vand.u32 2147483647, %v297
        %vm316 = vcmp.gt.f32.partialorder %v315, 0.5
        %v317 = vsel %vm316, %v314, 0.0
        %318 = vadd.xlane.f32.xlu0 %v317
        %v319 = vpop.xlane.xlu0 %318
        %v320 = vrot.slane %v319, 4
        %v321 = vadd.f32 %v319, %v320
        %v322 = vrot.slane %v321, 2
        %v323 = vadd.f32 %v321, %v322
        %v324 = vrot.slane %v323, 1
        %v325 = vadd.f32 %v323, %v324
        %s326 = vtos %v325
        %v327 = vstv %s326
        %328 = vst [vmem:[%s233] sm:$0x1] %v327
        %s329 = sand.u32 %s102, 1
        %s330 = scalar_lea.sflag [#allocation4], %s329
        %s331 = sand.u32 %s102, 1
        %s332 = scalar_lea.vmem [#allocation8], %s331
        // Predicated region
        $region45: #{tpu_custom_call.1} parent=31 // pred_check
          %p333 = pneg %p112
        $region46: #{tpu_custom_call.1} parent=31 // pred_check_branch
          %335 = sbr.rel (%p333) target = $region48
        $region47: #{tpu_custom_call.1} parent=31 // pred_region
          %s337 = ssub.s32 16, 16
          %338 = vsyncadd %s330, %s337
          %s339 = smul.addr %s21, 16
          %s340 = scalar_lea.hbm %s3, %s339
          %s342 = sshll.u32 %s332, 4
          %s343 = int_to_ptr.vmem [resolvable:$true] %s342
          %345 = dma.vmem_to_hbm [thread:$0]  %s343, 16, %s340, %s330
        $region48: #{tpu_custom_call.1} parent=31 // pred_fallthru
          _
      $region32: #{tpu_custom_call.1} parent=5 // pred_fallthru
        _
      %p346 = scmp.le.s32.totalorder 2, %s16
      // Predicated region
      $region49: #{tpu_custom_call.1} parent=5 // pred_check
        %p347 = pneg %p346
      $region50: #{tpu_custom_call.1} parent=5 // pred_check_branch
        %349 = sbr.rel (%p347) target = $region52
      $region51: #{tpu_custom_call.1} parent=5 // pred_region
        %s350 = ssub.s32 %s16, 2
        // Predicated region
        $region53: #{tpu_custom_call.1} parent=51 // pred_check
          %p351 = pneg %p118
        $region54: #{tpu_custom_call.1} parent=51 // pred_check_branch
          %353 = sbr.rel (%p351) target = $region56
        $region55: #{tpu_custom_call.1} parent=51 // pred_region
          %s354 = sand.u32 %s103, 1
          %s355 = scalar_lea.sflag [#allocation4], %s354
          %s356 = sand.u32 %s103, 1
          %s357 = scalar_lea.vmem [#allocation8], %s356
          %358 = dma.done %s355, 16
        $region56: #{tpu_custom_call.1} parent=51 // pred_fallthru
          _
      $region52: #{tpu_custom_call.1} parent=5 // pred_fallthru
        _
    $region6: #{tpu_custom_call.1} parent=1 // loop_footer
      %s20 = sadd.s32 1, %s16
    $region7: #{tpu_custom_call.1} parent=1 // loop_footer_branch
      %15 = sbr.rel target = $region3
    $region8: #{tpu_custom_call.1} parent=1 // loop_exit
      _
    %359 = vsyncpa [#allocation3], 1
    %s360 = scalar_lea.sflag [#allocation3], 1
    %361 = vsyncpa %s360, 1
    %362 = vsyncpa [#allocation6], 1
    %s363 = scalar_lea.sflag [#allocation6], 1
    %364 = vsyncpa %s363, 1
    %365 = vsyncpa [#allocation4], 1
    %s366 = scalar_lea.sflag [#allocation4], 1
    %367 = vsyncpa %s366, 1

</llo_original>
